<compile_context>
chip_gen: v5e
topology: v5e:2x2
jax: 0.10.0
libtpu: 0.0.40
codegen_flags: <defaults>
</compile_context>

<pallas_src>
import functools

import jax
import jax.numpy as jnp
from jax.experimental import pallas as pl
from jax.experimental.pallas import tpu as pltpu

HIDDEN = 256
LANE = 128


def _round_up(n, m):
    return ((n + m - 1) // m) * m


def _actor_kernel(ma_ref,
                  x_ref, w1_ref, b1_ref, w2_ref, b2_ref,
                  w3_ref, b3_ref, w4_ref, b4_ref,
                  o_ref, xp_ref, *, mxu_dtype, in_dim, act_dim):
    """Full MLP forward for one batch tile, entirely in VMEM.

    Matmul operands are cast to `mxu_dtype` (bf16 or f32); accumulation and
    all elementwise math (bias add, ReLU, tanh, scale) stay in f32.
    """
    max_action = ma_ref[0, 0]

    def dense(h, w_ref, b_ref):
        return jnp.dot(h.astype(mxu_dtype), w_ref[...],
                       preferred_element_type=jnp.float32) + b_ref[...]

    # Zero-pad the narrow (tile, in_dim) input tile into a lane-aligned
    # (tile, 128) f32 scratch. w1's padded rows are zero, so the extra columns
    # contribute nothing. Zeroed every step: it is cheap VPU work and keeps
    # each megacore core's scratch self-contained under "parallel" sharding.
    xp_ref[...] = jnp.zeros_like(xp_ref)
    xp_ref[:, :in_dim] = x_ref[...]

    h = jnp.maximum(dense(xp_ref[...], w1_ref, b1_ref), 0.0)
    h = jnp.maximum(dense(h, w2_ref, b2_ref), 0.0)
    h = jnp.maximum(dense(h, w3_ref, b3_ref), 0.0)

    # Final layer: lane-aligned matmul (N padded to 128), then only the real
    # act_dim lanes go through bias / tanh / scale and the narrow output store.
    a = jnp.dot(h.astype(mxu_dtype), w4_ref[...],
                preferred_element_type=jnp.float32)        # (tile, 128)
    a = a[:, :act_dim] + b4_ref[...]                       # (tile, act_dim)
    o_ref[...] = (max_action * jnp.tanh(a)).astype(o_ref.dtype)


def actor_forward(x, params, max_action, *, batch_tile=512, use_bf16=True):
    """Runs the actor MLP via a Pallas kernel, tiled over the batch axis.

    Weights are stored [in_features, out_features] (transposed vs. torch) so
    the kernel does x @ W + b directly on the MXU.
    """
    w1, b1, w2, b2, w3, b3, w4, b4 = params
    batch, in_dim = x.shape
    act_dim = w4.shape[1]

    mxu_dtype = jnp.bfloat16 if use_bf16 else jnp.float32

    in_pad = _round_up(in_dim, LANE)
    act_pad = _round_up(act_dim, LANE)

    # Weight-side padding only (tiny one-time cost; weights stay VMEM-resident):
    #   w1: pad K rows up to 128 with zeros;  w4: pad N cols up to 128 with zeros.
    # x and the output are NOT lane-padded in the wrapper.
    w1_p = (w1 if in_pad == in_dim
            else jnp.pad(w1, ((0, in_pad - in_dim), (0, 0)))).astype(mxu_dtype)
    w2_c = w2.astype(mxu_dtype)
    w3_c = w3.astype(mxu_dtype)
    w4_p = (w4 if act_pad == act_dim
            else jnp.pad(w4, ((0, 0), (0, act_pad - act_dim)))).astype(mxu_dtype)

    # --- Batch tiling --------------------------------------------------------
    batch_tile = max(8, _round_up(batch_tile, 8))
    padded_batch = _round_up(batch, 8)
    if padded_batch <= 8:
        tile = padded_batch                    # tiny batch: single grid step
    else:
        # Guarantee >= 2 grid steps so the "parallel" axis can shard across
        # v7x's two TensorCores; cap at batch_tile for larger batches.
        tile = min(batch_tile, _round_up(padded_batch // 2, 8))
        padded_batch = _round_up(batch, tile)

    # Single wrapper-side pad: batch rows only (x keeps its true column width).
    x_p = x if padded_batch == batch else jnp.pad(
        x, ((0, padded_batch - batch), (0, 0)))

    grid = (padded_batch // tile,)

    # Runtime scalar via SMEM (works with traced values, no recompiles).
    ma = jnp.full((1, 1), max_action, dtype=jnp.float32)

    def full(shape):
        # Whole array resident per grid step; constant index_map means Pallas
        # does not re-stage these between consecutive grid steps.
        # (Left at default buffering: a pl.Buffered(1) override would save
        #  <1 MB of a >=32 MiB budget and adds compile risk for no gain.)
        n = len(shape)
        return pl.BlockSpec(shape, lambda i, n=n: (0,) * n)

    out = pl.pallas_call(
        functools.partial(_actor_kernel, mxu_dtype=mxu_dtype,
                          in_dim=in_dim, act_dim=act_dim),
        out_shape=jax.ShapeDtypeStruct((padded_batch, act_dim), jnp.float32),
        grid_spec=pltpu.PrefetchScalarGridSpec(
            num_scalar_prefetch=0,
            grid=grid,
            in_specs=[
                pl.BlockSpec(memory_space=pltpu.MemorySpace.SMEM),  # max_action
                pl.BlockSpec((tile, in_dim), lambda i: (i, 0)),     # x at true width
                full(w1_p.shape), full(b1.shape),
                full(w2_c.shape), full(b2.shape),
                full(w3_c.shape), full(b3.shape),
                full(w4_p.shape), full(b4.shape),
            ],
            out_specs=pl.BlockSpec((tile, act_dim), lambda i: (i, 0)),
            scratch_shapes=[pltpu.VMEM((tile, in_pad), jnp.float32)],
        ),
        compiler_params=pltpu.CompilerParams(
            dimension_semantics=("parallel",)),
    )(ma, x_p, w1_p, b1, w2_c, b2, w3_c, b3, w4_p, b4)

    # Only batch padding to remove; output already has the true action width.
    return out[:batch] if padded_batch != batch else out


def init_params(key, in_dim, act_dim):
    """Deterministic init mimicking torch.nn.Linear default (uniform +-1/sqrt(fan_in))."""
    def linear(k, fan_in, fan_out):
        kw, kb = jax.random.split(k)
        bound = 1.0 / jnp.sqrt(fan_in)
        w = jax.random.uniform(kw, (fan_in, fan_out), jnp.float32, -bound, bound)
        b = jax.random.uniform(kb, (1, fan_out), jnp.float32, -bound, bound)
        return w, b

    k1, k2, k3, k4 = jax.random.split(key, 4)
    w1, b1 = linear(k1, in_dim, HIDDEN)
    w2, b2 = linear(k2, HIDDEN, HIDDEN)
    w3, b3 = linear(k3, HIDDEN, HIDDEN)
    w4, b4 = linear(k4, HIDDEN, act_dim)
    return (w1, b1, w2, b2, w3, b3, w4, b4)


def reference_forward(x, params, max_action):
    w1, b1, w2, b2, w3, b3, w4, b4 = params
    h = jnp.maximum(x @ w1 + b1, 0.0)
    h = jnp.maximum(h @ w2 + b2, 0.0)
    h = jnp.maximum(h @ w3 + b3, 0.0)
    return max_action * jnp.tanh(h @ w4 + b4)


if __name__ == "__main__":
    # env_params: obs=10, goal=3, action=4, action_max=1.0
    OBS, GOAL, ACTION = 10, 3, 4
    MAX_ACTION = 1.0
    IN_DIM = OBS + GOAL

    key = jax.random.PRNGKey(0)
    k_x, k_x2, k_p = jax.random.split(key, 3)
    params = init_params(k_p, IN_DIM, ACTION)

    # --- Small batch (single grid step path), exact f32 matmuls. -------------
    BATCH = 2
    x = jax.random.normal(k_x, (BATCH, IN_DIM), jnp.float32)
    ref = reference_forward(x, params, MAX_ACTION)

    out_f32 = jax.block_until_ready(
        actor_forward(x, params, MAX_ACTION, use_bf16=False))
    assert out_f32.shape == (BATCH, ACTION)
    assert jnp.allclose(out_f32, ref, atol=1e-5, rtol=1e-5), "f32 mismatch vs reference"

    # bf16 MXU operands, f32 accumulation: expect ~1e-2-level deviation.
    out_bf16 = jax.block_until_ready(
        actor_forward(x, params, MAX_ACTION, use_bf16=True))
    assert out_bf16.shape == (BATCH, ACTION)
    assert jnp.allclose(out_bf16, ref, atol=3e-2, rtol=3e-2), "bf16 mismatch vs reference"

    # --- Mid-size batch: auto tile split (>=2 grid steps), batch padding. ----
    BATCH2 = 300
    x2 = jax.random.normal(k_x2, (BATCH2, IN_DIM), jnp.float32)
    ref2 = reference_forward(x2, params, MAX_ACTION)
    out2 = jax.block_until_ready(
        actor_forward(x2, params, MAX_ACTION, use_bf16=False))
    assert out2.shape == (BATCH2, ACTION)
    assert jnp.allclose(out2, ref2, atol=1e-5, rtol=1e-5), "tiled mismatch vs reference"

    # --- Explicit small tile: many grid steps, exercises multi-step pipeline. -
    out3 = jax.block_until_ready(
        actor_forward(x2, params, MAX_ACTION, batch_tile=64, use_bf16=False))
    assert out3.shape == (BATCH2, ACTION)
    assert jnp.allclose(out3, ref2, atol=1e-5, rtol=1e-5), "small-tile mismatch vs reference"

    print("KERNEL_OK")
</pallas_src>

<mosaic_0001>
module attributes {stable_mosaic.version = 11 : i64} {
  func.func @_actor_kernel(%arg0: i32, %arg1: memref<1x1xf32, #tpu.memory_space<smem>>, %arg2: memref<8x13xf32, #tpu.memory_space<vmem>>, %arg3: memref<128x256xf32, #tpu.memory_space<vmem>>, %arg4: memref<1x256xf32, #tpu.memory_space<vmem>>, %arg5: memref<256x256xf32, #tpu.memory_space<vmem>>, %arg6: memref<1x256xf32, #tpu.memory_space<vmem>>, %arg7: memref<256x256xf32, #tpu.memory_space<vmem>>, %arg8: memref<1x256xf32, #tpu.memory_space<vmem>>, %arg9: memref<256x128xf32, #tpu.memory_space<vmem>>, %arg10: memref<1x4xf32, #tpu.memory_space<vmem>>, %arg11: memref<8x4xf32, #tpu.memory_space<vmem>>, %arg12: memref<8x128xf32, #tpu.memory_space<vmem>>) attributes {dimension_semantics = [#tpu.dimension_semantics<parallel>], iteration_bounds = array<i64: 1>, scalar_prefetch = 0 : i64, scratch_operands = 1 : i64, tpu.core_type = #tpu.core_type<tc>, window_params = [{transform_indices = @transform_0, window_bounds = array<i64: 1, 1>}, {transform_indices = @transform_1, window_bounds = array<i64: 8, 13>}, {pipeline_mode = #tpu.pipeline_mode<synchronous>, transform_indices = @transform_2, window_bounds = array<i64: 128, 256>}, {pipeline_mode = #tpu.pipeline_mode<synchronous>, transform_indices = @transform_3, window_bounds = array<i64: 1, 256>}, {pipeline_mode = #tpu.pipeline_mode<synchronous>, transform_indices = @transform_4, window_bounds = array<i64: 256, 256>}, {pipeline_mode = #tpu.pipeline_mode<synchronous>, transform_indices = @transform_5, window_bounds = array<i64: 1, 256>}, {pipeline_mode = #tpu.pipeline_mode<synchronous>, transform_indices = @transform_6, window_bounds = array<i64: 256, 256>}, {pipeline_mode = #tpu.pipeline_mode<synchronous>, transform_indices = @transform_7, window_bounds = array<i64: 1, 256>}, {pipeline_mode = #tpu.pipeline_mode<synchronous>, transform_indices = @transform_8, window_bounds = array<i64: 256, 128>}, {pipeline_mode = #tpu.pipeline_mode<synchronous>, transform_indices = @transform_9, window_bounds = array<i64: 1, 4>}, {transform_indices = @transform_10, window_bounds = array<i64: 8, 4>}]} {
    %c0 = arith.constant 0 : index
    %c0_0 = arith.constant 0 : index
    %0 = memref.load %arg1[%c0, %c0_0] : memref<1x1xf32, #tpu.memory_space<smem>>
    %cst = arith.constant 0.000000e+00 : f32
    %1 = vector.broadcast %cst : f32 to vector<8x128xf32>
    %c0_1 = arith.constant 0 : index
    %c0_2 = arith.constant 0 : index
    %2 = vector.load %arg12[%c0_1, %c0_2] : memref<8x128xf32, #tpu.memory_space<vmem>>, vector<8x128xf32>
    tpu.vector_store %arg12[%c0_1, %c0_2], %1 {strides = array<i32>} : memref<8x128xf32, #tpu.memory_space<vmem>>, vector<8x128xf32>,
    %c0_3 = arith.constant 0 : index
    %c0_4 = arith.constant 0 : index
    %3 = vector.load %arg2[%c0_3, %c0_4] : memref<8x13xf32, #tpu.memory_space<vmem>>, vector<8x13xf32>
    %c0_5 = arith.constant 0 : index
    %c0_6 = arith.constant 0 : index
    %4 = vector.load %arg12[%c0_5, %c0_6] : memref<8x128xf32, #tpu.memory_space<vmem>>, vector<8x13xf32>
    tpu.vector_store %arg12[%c0_5, %c0_6], %3 {strides = array<i32>} : memref<8x128xf32, #tpu.memory_space<vmem>>, vector<8x13xf32>,
    %c0_7 = arith.constant 0 : index
    %c0_8 = arith.constant 0 : index
    %5 = vector.load %arg12[%c0_7, %c0_8] : memref<8x128xf32, #tpu.memory_space<vmem>>, vector<8x128xf32>
    %c0_9 = arith.constant 0 : index
    %c0_10 = arith.constant 0 : index
    %6 = vector.load %arg3[%c0_9, %c0_10] : memref<128x256xf32, #tpu.memory_space<vmem>>, vector<128x256xf32>
    %cst_11 = arith.constant dense<0.000000e+00> : vector<8x256xf32>
    %7 = tpu.matmul %5, %6, %cst_11 {dimension_numbers = #tpu.dot_dimension_numbers<[1], [0], [0], [1], [0, 0, 1, 1], [], []>} : vector<8x128xf32>, vector<128x256xf32>, vector<8x256xf32> -> vector<8x256xf32>
    %c0_12 = arith.constant 0 : index
    %c0_13 = arith.constant 0 : index
    %8 = vector.load %arg4[%c0_12, %c0_13] : memref<1x256xf32, #tpu.memory_space<vmem>>, vector<1x256xf32>
    %9 = vector.broadcast %8 : vector<1x256xf32> to vector<8x256xf32>
    %10 = arith.addf %7, %9 : vector<8x256xf32>
    %cst_14 = arith.constant 0.000000e+00 : f32
    %11 = vector.broadcast %cst_14 : f32 to vector<8x256xf32>
    %12 = arith.maximumf %10, %11 : vector<8x256xf32>
    %c0_15 = arith.constant 0 : index
    %c0_16 = arith.constant 0 : index
    %13 = vector.load %arg5[%c0_15, %c0_16] : memref<256x256xf32, #tpu.memory_space<vmem>>, vector<256x256xf32>
    %cst_17 = arith.constant dense<0.000000e+00> : vector<8x256xf32>
    %14 = tpu.matmul %12, %13, %cst_17 {dimension_numbers = #tpu.dot_dimension_numbers<[1], [0], [0], [1], [0, 0, 1, 1], [], []>} : vector<8x256xf32>, vector<256x256xf32>, vector<8x256xf32> -> vector<8x256xf32>
    %c0_18 = arith.constant 0 : index
    %c0_19 = arith.constant 0 : index
    %15 = vector.load %arg6[%c0_18, %c0_19] : memref<1x256xf32, #tpu.memory_space<vmem>>, vector<1x256xf32>
    %16 = vector.broadcast %15 : vector<1x256xf32> to vector<8x256xf32>
    %17 = arith.addf %14, %16 : vector<8x256xf32>
    %cst_20 = arith.constant 0.000000e+00 : f32
    %18 = vector.broadcast %cst_20 : f32 to vector<8x256xf32>
    %19 = arith.maximumf %17, %18 : vector<8x256xf32>
    %c0_21 = arith.constant 0 : index
    %c0_22 = arith.constant 0 : index
    %20 = vector.load %arg7[%c0_21, %c0_22] : memref<256x256xf32, #tpu.memory_space<vmem>>, vector<256x256xf32>
    %cst_23 = arith.constant dense<0.000000e+00> : vector<8x256xf32>
    %21 = tpu.matmul %19, %20, %cst_23 {dimension_numbers = #tpu.dot_dimension_numbers<[1], [0], [0], [1], [0, 0, 1, 1], [], []>} : vector<8x256xf32>, vector<256x256xf32>, vector<8x256xf32> -> vector<8x256xf32>
    %c0_24 = arith.constant 0 : index
    %c0_25 = arith.constant 0 : index
    %22 = vector.load %arg8[%c0_24, %c0_25] : memref<1x256xf32, #tpu.memory_space<vmem>>, vector<1x256xf32>
    %23 = vector.broadcast %22 : vector<1x256xf32> to vector<8x256xf32>
    %24 = arith.addf %21, %23 : vector<8x256xf32>
    %cst_26 = arith.constant 0.000000e+00 : f32
    %25 = vector.broadcast %cst_26 : f32 to vector<8x256xf32>
    %26 = arith.maximumf %24, %25 : vector<8x256xf32>
    %c0_27 = arith.constant 0 : index
    %c0_28 = arith.constant 0 : index
    %27 = vector.load %arg9[%c0_27, %c0_28] : memref<256x128xf32, #tpu.memory_space<vmem>>, vector<256x128xf32>
    %cst_29 = arith.constant dense<0.000000e+00> : vector<8x128xf32>
    %28 = tpu.matmul %26, %27, %cst_29 {dimension_numbers = #tpu.dot_dimension_numbers<[1], [0], [0], [1], [0, 0, 1, 1], [], []>} : vector<8x256xf32>, vector<256x128xf32>, vector<8x128xf32> -> vector<8x128xf32>
    %29 = vector.extract_strided_slice %28 {offsets = [0, 0], sizes = [8, 4], strides = [1, 1]} : vector<8x128xf32> to vector<8x4xf32>
    %c0_30 = arith.constant 0 : index
    %c0_31 = arith.constant 0 : index
    %30 = vector.load %arg10[%c0_30, %c0_31] : memref<1x4xf32, #tpu.memory_space<vmem>>, vector<1x4xf32>
    %31 = vector.broadcast %30 : vector<1x4xf32> to vector<8x4xf32>
    %32 = arith.addf %29, %31 : vector<8x4xf32>
    %33 = math.tanh %32 : vector<8x4xf32>
    %34 = vector.broadcast %0 : f32 to vector<8x4xf32>
    %35 = arith.mulf %34, %33 : vector<8x4xf32>
    %c0_32 = arith.constant 0 : index
    %c0_33 = arith.constant 0 : index
    %36 = vector.load %arg11[%c0_32, %c0_33] : memref<8x4xf32, #tpu.memory_space<vmem>>, vector<8x4xf32>
    tpu.vector_store %arg11[%c0_32, %c0_33], %35 {strides = array<i32>} : memref<8x4xf32, #tpu.memory_space<vmem>>, vector<8x4xf32>,
    return
  }
  func.func @transform_0(%arg0: i32) -> (i32, i32) {
    %c0_i32 = arith.constant 0 : i32
    %c0_i32_0 = arith.constant 0 : i32
    %c0_i32_1 = arith.constant 0 : i32
    return %c0_i32, %c0_i32_0 : i32, i32
  }
  func.func @transform_1(%arg0: i32) -> (i32, i32) {
    %c0_i32 = arith.constant 0 : i32
    %c0_i32_0 = arith.constant 0 : i32
    return %arg0, %c0_i32 : i32, i32
  }
  func.func @transform_2(%arg0: i32) -> (i32, i32) {
    %c0_i32 = arith.constant 0 : i32
    %c0_i32_0 = arith.constant 0 : i32
    %c0_i32_1 = arith.constant 0 : i32
    return %c0_i32, %c0_i32_0 : i32, i32
  }
  func.func @transform_3(%arg0: i32) -> (i32, i32) {
    %c0_i32 = arith.constant 0 : i32
    %c0_i32_0 = arith.constant 0 : i32
    %c0_i32_1 = arith.constant 0 : i32
    return %c0_i32, %c0_i32_0 : i32, i32
  }
  func.func @transform_4(%arg0: i32) -> (i32, i32) {
    %c0_i32 = arith.constant 0 : i32
    %c0_i32_0 = arith.constant 0 : i32
    %c0_i32_1 = arith.constant 0 : i32
    return %c0_i32, %c0_i32_0 : i32, i32
  }
  func.func @transform_5(%arg0: i32) -> (i32, i32) {
    %c0_i32 = arith.constant 0 : i32
    %c0_i32_0 = arith.constant 0 : i32
    %c0_i32_1 = arith.constant 0 : i32
    return %c0_i32, %c0_i32_0 : i32, i32
  }
  func.func @transform_6(%arg0: i32) -> (i32, i32) {
    %c0_i32 = arith.constant 0 : i32
    %c0_i32_0 = arith.constant 0 : i32
    %c0_i32_1 = arith.constant 0 : i32
    return %c0_i32, %c0_i32_0 : i32, i32
  }
  func.func @transform_7(%arg0: i32) -> (i32, i32) {
    %c0_i32 = arith.constant 0 : i32
    %c0_i32_0 = arith.constant 0 : i32
    %c0_i32_1 = arith.constant 0 : i32
    return %c0_i32, %c0_i32_0 : i32, i32
  }
  func.func @transform_8(%arg0: i32) -> (i32, i32) {
    %c0_i32 = arith.constant 0 : i32
    %c0_i32_0 = arith.constant 0 : i32
    %c0_i32_1 = arith.constant 0 : i32
    return %c0_i32, %c0_i32_0 : i32, i32
  }
  func.func @transform_9(%arg0: i32) -> (i32, i32) {
    %c0_i32 = arith.constant 0 : i32
    %c0_i32_0 = arith.constant 0 : i32
    %c0_i32_1 = arith.constant 0 : i32
    return %c0_i32, %c0_i32_0 : i32, i32
  }
  func.func @transform_10(%arg0: i32) -> (i32, i32) {
    %c0_i32 = arith.constant 0 : i32
    %c0_i32_0 = arith.constant 0 : i32
    return %arg0, %c0_i32 : i32, i32
  }
}

</mosaic_0001>

<llo_original>
// kernel: tpu_custom_call.1
$region0: #{tpu_custom_call.1}
  #allocation0 [shape = 'u32[]', space=smem, size = 0x4, offset = 0x4, fixed_abs, tag = 'smem constant byte address 0x4 - core index']
  #allocation1 [shape = 'u32[72,128]{1,0:T(1,128)}', space=vmem, size = 0x9000, scoped, tag = 'internal scratch']
  #allocation2 [shape = 'f32[8,128]{1,0:T(8,128)}', space=vmem, size = 0x1000, scoped, tag = 'scratch operand']
  #allocation3 [shape = 'f32[1,1]{1,0:T(1,128)S(6)}', space=smem, size = 0x200, scoped, tag = 'scoped memory for tpu_custom_call.1']
  %s0 = inlined_call_operand.<no memory space> [shape: f32[1,1], index: 0, kind: input, shape index: {}]
  %s1 = inlined_call_operand.hbm [shape: f32[8,13], index: 1, kind: input, shape index: {}]
  %s2 = inlined_call_operand.hbm [shape: f32[128,256], index: 2, kind: input, shape index: {}]
  %s3 = inlined_call_operand.vmem [shape: f32[1,256], index: 3, kind: input, shape index: {}]
  %s4 = inlined_call_operand.hbm [shape: f32[256,256], index: 4, kind: input, shape index: {}]
  %s5 = inlined_call_operand.vmem [shape: f32[1,256], index: 5, kind: input, shape index: {}]
  %s6 = inlined_call_operand.hbm [shape: f32[256,256], index: 6, kind: input, shape index: {}]
  %s7 = inlined_call_operand.vmem [shape: f32[1,256], index: 7, kind: input, shape index: {}]
  %s8 = inlined_call_operand.hbm [shape: f32[256,128], index: 8, kind: input, shape index: {}]
  %s9 = inlined_call_operand.vmem [shape: f32[1,4], index: 9, kind: input, shape index: {}]
  %s10 = inlined_call_operand.vmem [shape: f32[8,4], index: 10, kind: output, shape index: {}]
  %s11 = sld [smem:[#allocation0]]
  $region70: #{tpu_custom_call.1} parent=0
    _
  %s13 = ssub.s32 1, %s11
  %s14 = scalar_select 0, %s13, %s11
  %15 = sst [smem:[#allocation3]] %s0
  $region1: #{tpu_custom_call.1} parent=0
    #allocation4 [shape = 'u8[4096]{0}', space=vmem, size = 0x1000, scoped, tag = 'input window, operand 1, single buffered']
    #allocation5 [shape = 's32[1]{0}', space=sflag, size = 0x4, scoped, tag = 'scoped memory for tpu_custom_call.1']
    #allocation6 [shape = 'u8[131072]{0}', space=vmem, size = 0x20000, scoped, tag = 'input window, operand 2, single buffered']
    #allocation7 [shape = 's32[1]{0}', space=sflag, size = 0x4, scoped, tag = 'scoped memory for tpu_custom_call.1']
    #allocation8 [shape = 'u8[262144]{0}', space=vmem, size = 0x40000, scoped, tag = 'input window, operand 4, single buffered']
    #allocation9 [shape = 'u8[262144]{0}', space=vmem, size = 0x40000, scoped, tag = 'input window, operand 6, single buffered']
    #allocation10 [shape = 's32[1]{0}', space=sflag, size = 0x4, scoped, tag = 'scoped memory for tpu_custom_call.1']
    #allocation11 [shape = 'u8[131072]{0}', space=vmem, size = 0x20000, scoped, tag = 'input window, operand 8, single buffered']
    %16 = vsyncpa [#allocation5], 0
    %17 = vsyncpa [#allocation7], 0
    %18 = vsyncpa [#allocation10], 0
    // Predicated region
    $region2: #{tpu_custom_call.1} parent=1 // pred_check
      _
    $region3: #{tpu_custom_call.1} parent=1 // pred_check_branch
      %20 = sbr.rel (0) target = $region5
    $region4: #{tpu_custom_call.1} parent=1 // pred_region
      _
    $region5: #{tpu_custom_call.1} parent=1 // pred_fallthru
      _
    // Predicated region
    $region6: #{tpu_custom_call.1} parent=1 // pred_check
      _
    $region7: #{tpu_custom_call.1} parent=1 // pred_check_branch
      %22 = sbr.rel (0) target = $region9
    $region8: #{tpu_custom_call.1} parent=1 // pred_region
      %24 = vsyncadd [#allocation5], 0
      %s26 = sshll.u32 %s1, 4
      %s27 = int_to_ptr.hbm [resolvable:$true] %s26
      %s28 = sshll.u32 [#allocation4], 4
      %s29 = int_to_ptr.vmem [resolvable:$true] %s28
      %31 = dma.hbm_to_vmem [thread:$0]  %s27, 128, %s29, [#allocation5]
    $region9: #{tpu_custom_call.1} parent=1 // pred_fallthru
      _
    // Predicated region
    $region10: #{tpu_custom_call.1} parent=1 // pred_check
      _
    $region11: #{tpu_custom_call.1} parent=1 // pred_check_branch
      %33 = sbr.rel (0) target = $region13
    $region12: #{tpu_custom_call.1} parent=1 // pred_region
      %35 = vsyncadd [#allocation7], 0
      %s36 = sshll.u32 %s2, 4
      %s37 = int_to_ptr.hbm [resolvable:$true] %s36
      %s38 = sshll.u32 [#allocation6], 4
      %s39 = int_to_ptr.vmem [resolvable:$true] %s38
      %44 = dma.hbm_to_vmem [thread:$0]  %s37, 4096, %s39, [#allocation7], 256, 256, 16
    $region13: #{tpu_custom_call.1} parent=1 // pred_fallthru
      _
    // Predicated region
    $region14: #{tpu_custom_call.1} parent=1 // pred_check
      _
    $region15: #{tpu_custom_call.1} parent=1 // pred_check_branch
      %46 = sbr.rel (0) target = $region17
    $region16: #{tpu_custom_call.1} parent=1 // pred_region
      _
    $region17: #{tpu_custom_call.1} parent=1 // pred_fallthru
      _
    // Predicated region
    $region18: #{tpu_custom_call.1} parent=1 // pred_check
      _
    $region19: #{tpu_custom_call.1} parent=1 // pred_check_branch
      %48 = sbr.rel (0) target = $region21
    $region20: #{tpu_custom_call.1} parent=1 // pred_region
      %50 = vsyncadd [#allocation7], 0
      %s51 = sshll.u32 %s4, 4
      %s52 = int_to_ptr.hbm [resolvable:$true] %s51
      %s53 = sshll.u32 [#allocation8], 4
      %s54 = int_to_ptr.vmem [resolvable:$true] %s53
      %59 = dma.hbm_to_vmem [thread:$0]  %s52, 8192, %s54, [#allocation7], 256, 256, 16
    $region21: #{tpu_custom_call.1} parent=1 // pred_fallthru
      _
    // Predicated region
    $region22: #{tpu_custom_call.1} parent=1 // pred_check
      _
    $region23: #{tpu_custom_call.1} parent=1 // pred_check_branch
      %61 = sbr.rel (0) target = $region25
    $region24: #{tpu_custom_call.1} parent=1 // pred_region
      _
    $region25: #{tpu_custom_call.1} parent=1 // pred_fallthru
      _
    // Predicated region
    $region26: #{tpu_custom_call.1} parent=1 // pred_check
      _
    $region27: #{tpu_custom_call.1} parent=1 // pred_check_branch
      %63 = sbr.rel (0) target = $region29
    $region28: #{tpu_custom_call.1} parent=1 // pred_region
      %65 = vsyncadd [#allocation10], 0
      %s66 = sshll.u32 %s6, 4
      %s67 = int_to_ptr.hbm [resolvable:$true] %s66
      %s68 = sshll.u32 [#allocation9], 4
      %s69 = int_to_ptr.vmem [resolvable:$true] %s68
      %74 = dma.hbm_to_vmem [thread:$0]  %s67, 8192, %s69, [#allocation10], 256, 256, 16
    $region29: #{tpu_custom_call.1} parent=1 // pred_fallthru
      _
    // Predicated region
    $region30: #{tpu_custom_call.1} parent=1 // pred_check
      _
    $region31: #{tpu_custom_call.1} parent=1 // pred_check_branch
      %76 = sbr.rel (0) target = $region33
    $region32: #{tpu_custom_call.1} parent=1 // pred_region
      _
    $region33: #{tpu_custom_call.1} parent=1 // pred_fallthru
      _
    // Predicated region
    $region34: #{tpu_custom_call.1} parent=1 // pred_check
      _
    $region35: #{tpu_custom_call.1} parent=1 // pred_check_branch
      %78 = sbr.rel (0) target = $region37
    $region36: #{tpu_custom_call.1} parent=1 // pred_region
      %80 = vsyncadd [#allocation10], 0
      %s81 = sshll.u32 %s8, 4
      %s82 = int_to_ptr.hbm [resolvable:$true] %s81
      %s83 = sshll.u32 [#allocation11], 4
      %s84 = int_to_ptr.vmem [resolvable:$true] %s83
      %89 = dma.hbm_to_vmem [thread:$0]  %s82, 4096, %s84, [#allocation10], 128, 128, 8
    $region37: #{tpu_custom_call.1} parent=1 // pred_fallthru
      _
    // Predicated region
    $region38: #{tpu_custom_call.1} parent=1 // pred_check
      _
    $region39: #{tpu_custom_call.1} parent=1 // pred_check_branch
      %91 = sbr.rel (0) target = $region41
    $region40: #{tpu_custom_call.1} parent=1 // pred_region
      _
    $region41: #{tpu_custom_call.1} parent=1 // pred_fallthru
      _
    // Predicated region
    $region42: #{tpu_custom_call.1} parent=1 // pred_check
      _
    $region43: #{tpu_custom_call.1} parent=1 // pred_check_branch
      %93 = sbr.rel (0) target = $region45
    $region44: #{tpu_custom_call.1} parent=1 // pred_region
      %95 = dma.done [#allocation5], 128
    $region45: #{tpu_custom_call.1} parent=1 // pred_fallthru
      _
    // Predicated region
    $region46: #{tpu_custom_call.1} parent=1 // pred_check
      _
    $region47: #{tpu_custom_call.1} parent=1 // pred_check_branch
      %97 = sbr.rel (0) target = $region49
    $region48: #{tpu_custom_call.1} parent=1 // pred_region
      %99 = dma.done [#allocation7], 4096
    $region49: #{tpu_custom_call.1} parent=1 // pred_fallthru
      _
    // Predicated region
    $region50: #{tpu_custom_call.1} parent=1 // pred_check
      _
    $region51: #{tpu_custom_call.1} parent=1 // pred_check_branch
      %101 = sbr.rel (0) target = $region53
    $region52: #{tpu_custom_call.1} parent=1 // pred_region
      %103 = dma.done [#allocation7], 8192
    $region53: #{tpu_custom_call.1} parent=1 // pred_fallthru
      _
    // Predicated region
    $region54: #{tpu_custom_call.1} parent=1 // pred_check
      _
    $region55: #{tpu_custom_call.1} parent=1 // pred_check_branch
      %105 = sbr.rel (0) target = $region57
    $region56: #{tpu_custom_call.1} parent=1 // pred_region
      %107 = dma.done [#allocation10], 8192
    $region57: #{tpu_custom_call.1} parent=1 // pred_fallthru
      _
    // Predicated region
    $region58: #{tpu_custom_call.1} parent=1 // pred_check
      _
    $region59: #{tpu_custom_call.1} parent=1 // pred_check_branch
      %109 = sbr.rel (0) target = $region61
    $region60: #{tpu_custom_call.1} parent=1 // pred_region
      %111 = dma.done [#allocation10], 4096
    $region61: #{tpu_custom_call.1} parent=1 // pred_fallthru
      _
    %s112 = sld [smem:[#allocation3]]
    %113 = vst [vmem:[#allocation2] sm:$0xff] 0.0
    %v114 = vld [vmem:[#allocation4] sm:$0xff]
    %vm115 = vcmask 105472
    %116 = vst.msk [vmem:[#allocation2] sm:$0xff] %vm115, %v114
    %v117 = vld [vmem:[#allocation2] sm:$0xff]
    %v118 = vld [vmem:[#allocation6] sm:$0xff]
    %v119 = vld [vmem:[#allocation6 + $0x8] sm:$0xff]
    %v120 = vld [vmem:[#allocation6 + $0x10] sm:$0xff]
    %v121 = vld [vmem:[#allocation6 + $0x18] sm:$0xff]
    %v122 = vld [vmem:[#allocation6 + $0x20] sm:$0xff]
    %v123 = vld [vmem:[#allocation6 + $0x28] sm:$0xff]
    %v124 = vld [vmem:[#allocation6 + $0x30] sm:$0xff]
    %v125 = vld [vmem:[#allocation6 + $0x38] sm:$0xff]
    %v126 = vld [vmem:[#allocation6 + $0x40] sm:$0xff]
    %v127 = vld [vmem:[#allocation6 + $0x48] sm:$0xff]
    %v128 = vld [vmem:[#allocation6 + $0x50] sm:$0xff]
    %v129 = vld [vmem:[#allocation6 + $0x58] sm:$0xff]
    %v130 = vld [vmem:[#allocation6 + $0x60] sm:$0xff]
    %v131 = vld [vmem:[#allocation6 + $0x68] sm:$0xff]
    %v132 = vld [vmem:[#allocation6 + $0x70] sm:$0xff]
    %v133 = vld [vmem:[#allocation6 + $0x78] sm:$0xff]
    %v134 = vld [vmem:[#allocation6 + $0x80] sm:$0xff]
    %v135 = vld [vmem:[#allocation6 + $0x88] sm:$0xff]
    %v136 = vld [vmem:[#allocation6 + $0x90] sm:$0xff]
    %v137 = vld [vmem:[#allocation6 + $0x98] sm:$0xff]
    %v138 = vld [vmem:[#allocation6 + $0xa0] sm:$0xff]
    %v139 = vld [vmem:[#allocation6 + $0xa8] sm:$0xff]
    %v140 = vld [vmem:[#allocation6 + $0xb0] sm:$0xff]
    %v141 = vld [vmem:[#allocation6 + $0xb8] sm:$0xff]
    %v142 = vld [vmem:[#allocation6 + $0xc0] sm:$0xff]
    %v143 = vld [vmem:[#allocation6 + $0xc8] sm:$0xff]
    %v144 = vld [vmem:[#allocation6 + $0xd0] sm:$0xff]
    %v145 = vld [vmem:[#allocation6 + $0xd8] sm:$0xff]
    %v146 = vld [vmem:[#allocation6 + $0xe0] sm:$0xff]
    %v147 = vld [vmem:[#allocation6 + $0xe8] sm:$0xff]
    %v148 = vld [vmem:[#allocation6 + $0xf0] sm:$0xff]
    %v149 = vld [vmem:[#allocation6 + $0xf8] sm:$0xff]
    %v150 = vld [vmem:[%s3] sm:$0x3]
    %v152 = vperm.slane %v150, 0
    %v153 = vperm.slane %v150, 1
    %156 = vmatpush.msra.mxu0 %v148
    %157 = vmatpush.msra.mxu0 %v146
    %158 = vmatpush.msra.mxu0 %v144
    %159 = vmatpush.msra.mxu0 %v142
    %160 = vmatpush.msra.mxu0 %v140
    %161 = vmatpush.msra.mxu0 %v138
    %162 = vmatpush.msra.mxu0 %v136
    %163 = vmatpush.msra.mxu0 %v134
    %164 = vmatpush.msra.mxu0 %v132
    %165 = vmatpush.msra.mxu0 %v130
    %166 = vmatpush.msra.mxu0 %v128
    %167 = vmatpush.msra.mxu0 %v126
    %168 = vmatpush.msra.mxu0 %v124
    %169 = vmatpush.msra.mxu0 %v122
    %170 = vmatpush.msra.mxu0 %v120
    %171 = vmatpush.msra.mxu0 %v118
    %172 = vmatmul.f32.gmra.mxu0 %v117
    %v173 = vpop.f32.mrf.mxu0
    %v174 = vadd.f32 %v152, %v173
    %175 = vdwg.mxu0
    %176 = vmatpush.msra.mxu0 %v149
    %177 = vmatpush.msra.mxu0 %v147
    %178 = vmatpush.msra.mxu0 %v145
    %179 = vmatpush.msra.mxu0 %v143
    %180 = vmatpush.msra.mxu0 %v141
    %181 = vmatpush.msra.mxu0 %v139
    %182 = vmatpush.msra.mxu0 %v137
    %183 = vmatpush.msra.mxu0 %v135
    %184 = vmatpush.msra.mxu0 %v133
    %185 = vmatpush.msra.mxu0 %v131
    %186 = vmatpush.msra.mxu0 %v129
    %187 = vmatpush.msra.mxu0 %v127
    %188 = vmatpush.msra.mxu0 %v125
    %189 = vmatpush.msra.mxu0 %v123
    %190 = vmatpush.msra.mxu0 %v121
    %191 = vmatpush.msra.mxu0 %v119
    %192 = vmatmul.f32.gmra.mxu0 %v117
    %v193 = vpop.f32.mrf.mxu0
    %v194 = vadd.f32 %v153, %v193
    %195 = vdwg.mxu0
    %v196 = vmax.f32 %v174, 0.0
    %v197 = vmax.f32 %v194, 0.0
    %v198 = vld [vmem:[#allocation8] sm:$0xff]
    %v199 = vld [vmem:[#allocation8 + $0x8] sm:$0xff]
    %v200 = vld [vmem:[#allocation8 + $0x10] sm:$0xff]
    %v201 = vld [vmem:[#allocation8 + $0x18] sm:$0xff]
    %v202 = vld [vmem:[#allocation8 + $0x20] sm:$0xff]
    %v203 = vld [vmem:[#allocation8 + $0x28] sm:$0xff]
    %v204 = vld [vmem:[#allocation8 + $0x30] sm:$0xff]
    %v205 = vld [vmem:[#allocation8 + $0x38] sm:$0xff]
    %v206 = vld [vmem:[#allocation8 + $0x40] sm:$0xff]
    %v207 = vld [vmem:[#allocation8 + $0x48] sm:$0xff]
    %v208 = vld [vmem:[#allocation8 + $0x50] sm:$0xff]
    %v209 = vld [vmem:[#allocation8 + $0x58] sm:$0xff]
    %v210 = vld [vmem:[#allocation8 + $0x60] sm:$0xff]
    %v211 = vld [vmem:[#allocation8 + $0x68] sm:$0xff]
    %v212 = vld [vmem:[#allocation8 + $0x70] sm:$0xff]
    %v213 = vld [vmem:[#allocation8 + $0x78] sm:$0xff]
    %v214 = vld [vmem:[#allocation8 + $0x80] sm:$0xff]
    %v215 = vld [vmem:[#allocation8 + $0x88] sm:$0xff]
    %v216 = vld [vmem:[#allocation8 + $0x90] sm:$0xff]
    %v217 = vld [vmem:[#allocation8 + $0x98] sm:$0xff]
    %v218 = vld [vmem:[#allocation8 + $0xa0] sm:$0xff]
    %v219 = vld [vmem:[#allocation8 + $0xa8] sm:$0xff]
    %v220 = vld [vmem:[#allocation8 + $0xb0] sm:$0xff]
    %v221 = vld [vmem:[#allocation8 + $0xb8] sm:$0xff]
    %v222 = vld [vmem:[#allocation8 + $0xc0] sm:$0xff]
    %v223 = vld [vmem:[#allocation8 + $0xc8] sm:$0xff]
    %v224 = vld [vmem:[#allocation8 + $0xd0] sm:$0xff]
    %v225 = vld [vmem:[#allocation8 + $0xd8] sm:$0xff]
    %v226 = vld [vmem:[#allocation8 + $0xe0] sm:$0xff]
    %v227 = vld [vmem:[#allocation8 + $0xe8] sm:$0xff]
    %v228 = vld [vmem:[#allocation8 + $0xf0] sm:$0xff]
    %v229 = vld [vmem:[#allocation8 + $0xf8] sm:$0xff]
    %v230 = vld [vmem:[#allocation8 + $0x100] sm:$0xff]
    %v231 = vld [vmem:[#allocation8 + $0x108] sm:$0xff]
    %v232 = vld [vmem:[#allocation8 + $0x110] sm:$0xff]
    %v233 = vld [vmem:[#allocation8 + $0x118] sm:$0xff]
    %v234 = vld [vmem:[#allocation8 + $0x120] sm:$0xff]
    %v235 = vld [vmem:[#allocation8 + $0x128] sm:$0xff]
    %v236 = vld [vmem:[#allocation8 + $0x130] sm:$0xff]
    %v237 = vld [vmem:[#allocation8 + $0x138] sm:$0xff]
    %v238 = vld [vmem:[#allocation8 + $0x140] sm:$0xff]
    %v239 = vld [vmem:[#allocation8 + $0x148] sm:$0xff]
    %v240 = vld [vmem:[#allocation8 + $0x150] sm:$0xff]
    %v241 = vld [vmem:[#allocation8 + $0x158] sm:$0xff]
    %v242 = vld [vmem:[#allocation8 + $0x160] sm:$0xff]
    %v243 = vld [vmem:[#allocation8 + $0x168] sm:$0xff]
    %v244 = vld [vmem:[#allocation8 + $0x170] sm:$0xff]
    %v245 = vld [vmem:[#allocation8 + $0x178] sm:$0xff]
    %v246 = vld [vmem:[#allocation8 + $0x180] sm:$0xff]
    %v247 = vld [vmem:[#allocation8 + $0x188] sm:$0xff]
    %v248 = vld [vmem:[#allocation8 + $0x190] sm:$0xff]
    %v249 = vld [vmem:[#allocation8 + $0x198] sm:$0xff]
    %v250 = vld [vmem:[#allocation8 + $0x1a0] sm:$0xff]
    %v251 = vld [vmem:[#allocation8 + $0x1a8] sm:$0xff]
    %v252 = vld [vmem:[#allocation8 + $0x1b0] sm:$0xff]
    %v253 = vld [vmem:[#allocation8 + $0x1b8] sm:$0xff]
    %v254 = vld [vmem:[#allocation8 + $0x1c0] sm:$0xff]
    %v255 = vld [vmem:[#allocation8 + $0x1c8] sm:$0xff]
    %v256 = vld [vmem:[#allocation8 + $0x1d0] sm:$0xff]
    %v257 = vld [vmem:[#allocation8 + $0x1d8] sm:$0xff]
    %v258 = vld [vmem:[#allocation8 + $0x1e0] sm:$0xff]
    %v259 = vld [vmem:[#allocation8 + $0x1e8] sm:$0xff]
    %v260 = vld [vmem:[#allocation8 + $0x1f0] sm:$0xff]
    %v261 = vld [vmem:[#allocation8 + $0x1f8] sm:$0xff]
    %v262 = vld [vmem:[%s5] sm:$0x3]
    %v264 = vperm.slane %v262, 0
    %v265 = vperm.slane %v262, 1
    %268 = vmatpush.msra.mxu0 %v228
    %269 = vmatpush.msra.mxu0 %v226
    %270 = vmatpush.msra.mxu0 %v224
    %271 = vmatpush.msra.mxu0 %v222
    %272 = vmatpush.msra.mxu0 %v220
    %273 = vmatpush.msra.mxu0 %v218
    %274 = vmatpush.msra.mxu0 %v216
    %275 = vmatpush.msra.mxu0 %v214
    %276 = vmatpush.msra.mxu0 %v212
    %277 = vmatpush.msra.mxu0 %v210
    %278 = vmatpush.msra.mxu0 %v208
    %279 = vmatpush.msra.mxu0 %v206
    %280 = vmatpush.msra.mxu0 %v204
    %281 = vmatpush.msra.mxu0 %v202
    %282 = vmatpush.msra.mxu0 %v200
    %283 = vmatpush.msra.mxu0 %v198
    %284 = vmatmul.f32.gmra.mxu0 %v196
    %v285 = vpop.f32.mrf.mxu0
    %v286 = vadd.f32 %v264, %v285
    %287 = vdwg.mxu0
    %288 = vmatpush.msra.mxu0 %v260
    %289 = vmatpush.msra.mxu0 %v258
    %290 = vmatpush.msra.mxu0 %v256
    %291 = vmatpush.msra.mxu0 %v254
    %292 = vmatpush.msra.mxu0 %v252
    %293 = vmatpush.msra.mxu0 %v250
    %294 = vmatpush.msra.mxu0 %v248
    %295 = vmatpush.msra.mxu0 %v246
    %296 = vmatpush.msra.mxu0 %v244
    %297 = vmatpush.msra.mxu0 %v242
    %298 = vmatpush.msra.mxu0 %v240
    %299 = vmatpush.msra.mxu0 %v238
    %300 = vmatpush.msra.mxu0 %v236
    %301 = vmatpush.msra.mxu0 %v234
    %302 = vmatpush.msra.mxu0 %v232
    %303 = vmatpush.msra.mxu0 %v230
    %304 = vmatmul.f32.gmra.mxu0 %v197
    %v305 = vpop.f32.mrf.mxu0
    %v306 = vadd.f32 %v286, %v305
    %307 = vdwg.mxu0
    %308 = vmatpush.msra.mxu0 %v229
    %309 = vmatpush.msra.mxu0 %v227
    %310 = vmatpush.msra.mxu0 %v225
    %311 = vmatpush.msra.mxu0 %v223
    %312 = vmatpush.msra.mxu0 %v221
    %313 = vmatpush.msra.mxu0 %v219
    %314 = vmatpush.msra.mxu0 %v217
    %315 = vmatpush.msra.mxu0 %v215
    %316 = vmatpush.msra.mxu0 %v213
    %317 = vmatpush.msra.mxu0 %v211
    %318 = vmatpush.msra.mxu0 %v209
    %319 = vmatpush.msra.mxu0 %v207
    %320 = vmatpush.msra.mxu0 %v205
    %321 = vmatpush.msra.mxu0 %v203
    %322 = vmatpush.msra.mxu0 %v201
    %323 = vmatpush.msra.mxu0 %v199
    %324 = vmatmul.f32.gmra.mxu0 %v196
    %v325 = vpop.f32.mrf.mxu0
    %v326 = vadd.f32 %v265, %v325
    %327 = vdwg.mxu0
    %328 = vmatpush.msra.mxu0 %v261
    %329 = vmatpush.msra.mxu0 %v259
    %330 = vmatpush.msra.mxu0 %v257
    %331 = vmatpush.msra.mxu0 %v255
    %332 = vmatpush.msra.mxu0 %v253
    %333 = vmatpush.msra.mxu0 %v251
    %334 = vmatpush.msra.mxu0 %v249
    %335 = vmatpush.msra.mxu0 %v247
    %336 = vmatpush.msra.mxu0 %v245
    %337 = vmatpush.msra.mxu0 %v243
    %338 = vmatpush.msra.mxu0 %v241
    %339 = vmatpush.msra.mxu0 %v239
    %340 = vmatpush.msra.mxu0 %v237
    %341 = vmatpush.msra.mxu0 %v235
    %342 = vmatpush.msra.mxu0 %v233
    %343 = vmatpush.msra.mxu0 %v231
    %344 = vmatmul.f32.gmra.mxu0 %v197
    %v345 = vpop.f32.mrf.mxu0
    %v346 = vadd.f32 %v326, %v345
    %347 = vdwg.mxu0
    %v348 = vmax.f32 %v306, 0.0
    %v349 = vmax.f32 %v346, 0.0
    %v350 = vld [vmem:[#allocation9] sm:$0xff]
    %v351 = vld [vmem:[#allocation9 + $0x8] sm:$0xff]
    %v352 = vld [vmem:[#allocation9 + $0x10] sm:$0xff]
    %v353 = vld [vmem:[#allocation9 + $0x18] sm:$0xff]
    %v354 = vld [vmem:[#allocation9 + $0x20] sm:$0xff]
    %v355 = vld [vmem:[#allocation9 + $0x28] sm:$0xff]
    %v356 = vld [vmem:[#allocation9 + $0x30] sm:$0xff]
    %v357 = vld [vmem:[#allocation9 + $0x38] sm:$0xff]
    %v358 = vld [vmem:[#allocation9 + $0x40] sm:$0xff]
    %v359 = vld [vmem:[#allocation9 + $0x48] sm:$0xff]
    %v360 = vld [vmem:[#allocation9 + $0x50] sm:$0xff]
    %v361 = vld [vmem:[#allocation9 + $0x58] sm:$0xff]
    %v362 = vld [vmem:[#allocation9 + $0x60] sm:$0xff]
    %v363 = vld [vmem:[#allocation9 + $0x68] sm:$0xff]
    %v364 = vld [vmem:[#allocation9 + $0x70] sm:$0xff]
    %v365 = vld [vmem:[#allocation9 + $0x78] sm:$0xff]
    %v366 = vld [vmem:[#allocation9 + $0x80] sm:$0xff]
    %v367 = vld [vmem:[#allocation9 + $0x88] sm:$0xff]
    %v368 = vld [vmem:[#allocation9 + $0x90] sm:$0xff]
    %v369 = vld [vmem:[#allocation9 + $0x98] sm:$0xff]
    %v370 = vld [vmem:[#allocation9 + $0xa0] sm:$0xff]
    %v371 = vld [vmem:[#allocation9 + $0xa8] sm:$0xff]
    %v372 = vld [vmem:[#allocation9 + $0xb0] sm:$0xff]
    %v373 = vld [vmem:[#allocation9 + $0xb8] sm:$0xff]
    %v374 = vld [vmem:[#allocation9 + $0xc0] sm:$0xff]
    %v375 = vld [vmem:[#allocation9 + $0xc8] sm:$0xff]
    %v376 = vld [vmem:[#allocation9 + $0xd0] sm:$0xff]
    %v377 = vld [vmem:[#allocation9 + $0xd8] sm:$0xff]
    %v378 = vld [vmem:[#allocation9 + $0xe0] sm:$0xff]
    %v379 = vld [vmem:[#allocation9 + $0xe8] sm:$0xff]
    %v380 = vld [vmem:[#allocation9 + $0xf0] sm:$0xff]
    %v381 = vld [vmem:[#allocation9 + $0xf8] sm:$0xff]
    %v382 = vld [vmem:[#allocation9 + $0x100] sm:$0xff]
    %v383 = vld [vmem:[#allocation9 + $0x108] sm:$0xff]
    %v384 = vld [vmem:[#allocation9 + $0x110] sm:$0xff]
    %v385 = vld [vmem:[#allocation9 + $0x118] sm:$0xff]
    %v386 = vld [vmem:[#allocation9 + $0x120] sm:$0xff]
    %v387 = vld [vmem:[#allocation9 + $0x128] sm:$0xff]
    %v388 = vld [vmem:[#allocation9 + $0x130] sm:$0xff]
    %v389 = vld [vmem:[#allocation9 + $0x138] sm:$0xff]
    %v390 = vld [vmem:[#allocation9 + $0x140] sm:$0xff]
    %v391 = vld [vmem:[#allocation9 + $0x148] sm:$0xff]
    %v392 = vld [vmem:[#allocation9 + $0x150] sm:$0xff]
    %v393 = vld [vmem:[#allocation9 + $0x158] sm:$0xff]
    %v394 = vld [vmem:[#allocation9 + $0x160] sm:$0xff]
    %v395 = vld [vmem:[#allocation9 + $0x168] sm:$0xff]
    %v396 = vld [vmem:[#allocation9 + $0x170] sm:$0xff]
    %v397 = vld [vmem:[#allocation9 + $0x178] sm:$0xff]
    %v398 = vld [vmem:[#allocation9 + $0x180] sm:$0xff]
    %v399 = vld [vmem:[#allocation9 + $0x188] sm:$0xff]
    %v400 = vld [vmem:[#allocation9 + $0x190] sm:$0xff]
    %v401 = vld [vmem:[#allocation9 + $0x198] sm:$0xff]
    %v402 = vld [vmem:[#allocation9 + $0x1a0] sm:$0xff]
    %v403 = vld [vmem:[#allocation9 + $0x1a8] sm:$0xff]
    %v404 = vld [vmem:[#allocation9 + $0x1b0] sm:$0xff]
    %v405 = vld [vmem:[#allocation9 + $0x1b8] sm:$0xff]
    %v406 = vld [vmem:[#allocation9 + $0x1c0] sm:$0xff]
    %v407 = vld [vmem:[#allocation9 + $0x1c8] sm:$0xff]
    %v408 = vld [vmem:[#allocation9 + $0x1d0] sm:$0xff]
    %v409 = vld [vmem:[#allocation9 + $0x1d8] sm:$0xff]
    %v410 = vld [vmem:[#allocation9 + $0x1e0] sm:$0xff]
    %v411 = vld [vmem:[#allocation9 + $0x1e8] sm:$0xff]
    %v412 = vld [vmem:[#allocation9 + $0x1f0] sm:$0xff]
    %v413 = vld [vmem:[#allocation9 + $0x1f8] sm:$0xff]
    %v414 = vld [vmem:[%s7] sm:$0x3]
    %v416 = vperm.slane %v414, 0
    %v417 = vperm.slane %v414, 1
    %420 = vmatpush.msra.mxu0 %v380
    %421 = vmatpush.msra.mxu0 %v378
    %422 = vmatpush.msra.mxu0 %v376
    %423 = vmatpush.msra.mxu0 %v374
    %424 = vmatpush.msra.mxu0 %v372
    %425 = vmatpush.msra.mxu0 %v370
    %426 = vmatpush.msra.mxu0 %v368
    %427 = vmatpush.msra.mxu0 %v366
    %428 = vmatpush.msra.mxu0 %v364
    %429 = vmatpush.msra.mxu0 %v362
    %430 = vmatpush.msra.mxu0 %v360
    %431 = vmatpush.msra.mxu0 %v358
    %432 = vmatpush.msra.mxu0 %v356
    %433 = vmatpush.msra.mxu0 %v354
    %434 = vmatpush.msra.mxu0 %v352
    %435 = vmatpush.msra.mxu0 %v350
    %436 = vmatmul.f32.gmra.mxu0 %v348
    %v437 = vpop.f32.mrf.mxu0
    %v438 = vadd.f32 %v416, %v437
    %439 = vdwg.mxu0
    %440 = vmatpush.msra.mxu0 %v412
    %441 = vmatpush.msra.mxu0 %v410
    %442 = vmatpush.msra.mxu0 %v408
    %443 = vmatpush.msra.mxu0 %v406
    %444 = vmatpush.msra.mxu0 %v404
    %445 = vmatpush.msra.mxu0 %v402
    %446 = vmatpush.msra.mxu0 %v400
    %447 = vmatpush.msra.mxu0 %v398
    %448 = vmatpush.msra.mxu0 %v396
    %449 = vmatpush.msra.mxu0 %v394
    %450 = vmatpush.msra.mxu0 %v392
    %451 = vmatpush.msra.mxu0 %v390
    %452 = vmatpush.msra.mxu0 %v388
    %453 = vmatpush.msra.mxu0 %v386
    %454 = vmatpush.msra.mxu0 %v384
    %455 = vmatpush.msra.mxu0 %v382
    %456 = vmatmul.f32.gmra.mxu0 %v349
    %v457 = vpop.f32.mrf.mxu0
    %v458 = vadd.f32 %v438, %v457
    %459 = vdwg.mxu0
    %460 = vmatpush.msra.mxu0 %v381
    %461 = vmatpush.msra.mxu0 %v379
    %462 = vmatpush.msra.mxu0 %v377
    %463 = vmatpush.msra.mxu0 %v375
    %464 = vmatpush.msra.mxu0 %v373
    %465 = vmatpush.msra.mxu0 %v371
    %466 = vmatpush.msra.mxu0 %v369
    %467 = vmatpush.msra.mxu0 %v367
    %468 = vmatpush.msra.mxu0 %v365
    %469 = vmatpush.msra.mxu0 %v363
    %470 = vmatpush.msra.mxu0 %v361
    %471 = vmatpush.msra.mxu0 %v359
    %472 = vmatpush.msra.mxu0 %v357
    %473 = vmatpush.msra.mxu0 %v355
    %474 = vmatpush.msra.mxu0 %v353
    %475 = vmatpush.msra.mxu0 %v351
    %476 = vmatmul.f32.gmra.mxu0 %v348
    %v477 = vpop.f32.mrf.mxu0
    %v478 = vadd.f32 %v417, %v477
    %479 = vdwg.mxu0
    %480 = vmatpush.msra.mxu0 %v413
    %481 = vmatpush.msra.mxu0 %v411
    %482 = vmatpush.msra.mxu0 %v409
    %483 = vmatpush.msra.mxu0 %v407
    %484 = vmatpush.msra.mxu0 %v405
    %485 = vmatpush.msra.mxu0 %v403
    %486 = vmatpush.msra.mxu0 %v401
    %487 = vmatpush.msra.mxu0 %v399
    %488 = vmatpush.msra.mxu0 %v397
    %489 = vmatpush.msra.mxu0 %v395
    %490 = vmatpush.msra.mxu0 %v393
    %491 = vmatpush.msra.mxu0 %v391
    %492 = vmatpush.msra.mxu0 %v389
    %493 = vmatpush.msra.mxu0 %v387
    %494 = vmatpush.msra.mxu0 %v385
    %495 = vmatpush.msra.mxu0 %v383
    %496 = vmatmul.f32.gmra.mxu0 %v349
    %v497 = vpop.f32.mrf.mxu0
    %v498 = vadd.f32 %v478, %v497
    %499 = vdwg.mxu0
    %v500 = vmax.f32 %v458, 0.0
    %v501 = vmax.f32 %v498, 0.0
    %v502 = vld [vmem:[#allocation11] sm:$0xff]
    %v503 = vld [vmem:[#allocation11 + $0x8] sm:$0xff]
    %v504 = vld [vmem:[#allocation11 + $0x10] sm:$0xff]
    %v505 = vld [vmem:[#allocation11 + $0x18] sm:$0xff]
    %v506 = vld [vmem:[#allocation11 + $0x20] sm:$0xff]
    %v507 = vld [vmem:[#allocation11 + $0x28] sm:$0xff]
    %v508 = vld [vmem:[#allocation11 + $0x30] sm:$0xff]
    %v509 = vld [vmem:[#allocation11 + $0x38] sm:$0xff]
    %v510 = vld [vmem:[#allocation11 + $0x40] sm:$0xff]
    %v511 = vld [vmem:[#allocation11 + $0x48] sm:$0xff]
    %v512 = vld [vmem:[#allocation11 + $0x50] sm:$0xff]
    %v513 = vld [vmem:[#allocation11 + $0x58] sm:$0xff]
    %v514 = vld [vmem:[#allocation11 + $0x60] sm:$0xff]
    %v515 = vld [vmem:[#allocation11 + $0x68] sm:$0xff]
    %v516 = vld [vmem:[#allocation11 + $0x70] sm:$0xff]
    %v517 = vld [vmem:[#allocation11 + $0x78] sm:$0xff]
    %v518 = vld [vmem:[#allocation11 + $0x80] sm:$0xff]
    %v519 = vld [vmem:[#allocation11 + $0x88] sm:$0xff]
    %v520 = vld [vmem:[#allocation11 + $0x90] sm:$0xff]
    %v521 = vld [vmem:[#allocation11 + $0x98] sm:$0xff]
    %v522 = vld [vmem:[#allocation11 + $0xa0] sm:$0xff]
    %v523 = vld [vmem:[#allocation11 + $0xa8] sm:$0xff]
    %v524 = vld [vmem:[#allocation11 + $0xb0] sm:$0xff]
    %v525 = vld [vmem:[#allocation11 + $0xb8] sm:$0xff]
    %v526 = vld [vmem:[#allocation11 + $0xc0] sm:$0xff]
    %v527 = vld [vmem:[#allocation11 + $0xc8] sm:$0xff]
    %v528 = vld [vmem:[#allocation11 + $0xd0] sm:$0xff]
    %v529 = vld [vmem:[#allocation11 + $0xd8] sm:$0xff]
    %v530 = vld [vmem:[#allocation11 + $0xe0] sm:$0xff]
    %v531 = vld [vmem:[#allocation11 + $0xe8] sm:$0xff]
    %v532 = vld [vmem:[#allocation11 + $0xf0] sm:$0xff]
    %v533 = vld [vmem:[#allocation11 + $0xf8] sm:$0xff]
    %534 = vmatpush.msra.mxu0 %v517
    %535 = vmatpush.msra.mxu0 %v516
    %536 = vmatpush.msra.mxu0 %v515
    %537 = vmatpush.msra.mxu0 %v514
    %538 = vmatpush.msra.mxu0 %v513
    %539 = vmatpush.msra.mxu0 %v512
    %540 = vmatpush.msra.mxu0 %v511
    %541 = vmatpush.msra.mxu0 %v510
    %542 = vmatpush.msra.mxu0 %v509
    %543 = vmatpush.msra.mxu0 %v508
    %544 = vmatpush.msra.mxu0 %v507
    %545 = vmatpush.msra.mxu0 %v506
    %546 = vmatpush.msra.mxu0 %v505
    %547 = vmatpush.msra.mxu0 %v504
    %548 = vmatpush.msra.mxu0 %v503
    %549 = vmatpush.msra.mxu0 %v502
    %550 = vmatmul.f32.gmra.mxu0 %v500
    %v551 = vpop.f32.mrf.mxu0
    %v552 = vadd.f32 0.0, %v551
    %553 = vdwg.mxu0
    %554 = vmatpush.msra.mxu0 %v533
    %555 = vmatpush.msra.mxu0 %v532
    %556 = vmatpush.msra.mxu0 %v531
    %557 = vmatpush.msra.mxu0 %v530
    %558 = vmatpush.msra.mxu0 %v529
    %559 = vmatpush.msra.mxu0 %v528
    %560 = vmatpush.msra.mxu0 %v527
    %561 = vmatpush.msra.mxu0 %v526
    %562 = vmatpush.msra.mxu0 %v525
    %563 = vmatpush.msra.mxu0 %v524
    %564 = vmatpush.msra.mxu0 %v523
    %565 = vmatpush.msra.mxu0 %v522
    %566 = vmatpush.msra.mxu0 %v521
    %567 = vmatpush.msra.mxu0 %v520
    %568 = vmatpush.msra.mxu0 %v519
    %569 = vmatpush.msra.mxu0 %v518
    %570 = vmatmul.f32.gmra.mxu0 %v501
    %v571 = vpop.f32.mrf.mxu0
    %v572 = vadd.f32 %v552, %v571
    %573 = vdwg.mxu0
    %v574 = vld [vmem:[%s9] sm:$0x1]
    %v576 = vperm.slane %v574, 0
    %v578 = vadd.f32 %v572, %v576
    %v579 = vtanh.pop %v578
    %v580 = vstv %s112
    %v581 = vmul.f32 %v580, %v579
    %vm582 = vcmask 31744
    %583 = vst.msk [vmem:[%s10] sm:$0xff] %vm582, %v581
    // Predicated region
    $region62: #{tpu_custom_call.1} parent=1 // pred_check
      _
    $region63: #{tpu_custom_call.1} parent=1 // pred_check_branch
      %585 = sbr.rel (0) target = $region65
    $region64: #{tpu_custom_call.1} parent=1 // pred_region
      _
    $region65: #{tpu_custom_call.1} parent=1 // pred_fallthru
      _
    // Predicated region
    $region66: #{tpu_custom_call.1} parent=1 // pred_check
      _
    $region67: #{tpu_custom_call.1} parent=1 // pred_check_branch
      %587 = sbr.rel (0) target = $region69
    $region68: #{tpu_custom_call.1} parent=1 // pred_region
      _
    $region69: #{tpu_custom_call.1} parent=1 // pred_fallthru
      _
    %588 = vsyncpa [#allocation5], 1
    %589 = vsyncpa [#allocation7], 1
    %590 = vsyncpa [#allocation10], 1

</llo_original>
